<compile_context>
chip_gen: v7x
topology: tpu7x:2x2x1
jax: 0.10.0
libtpu: 0.0.40
codegen_flags: <defaults>
</compile_context>

<pallas_src>
import functools

import jax
import jax.numpy as jnp
from jax.experimental import pallas as pl
from jax.experimental.pallas import tpu as pltpu


# ---------------------------------------------------------------------------
# Fused single-pass kernel: whole (Bt, C, W) slab resident per grid step.
# ---------------------------------------------------------------------------
def _se_fused_kernel(x_ref, w1_ref, w2_ref, o_ref):
    # x_ref: (Bt, C, W) block — W on lanes, C on sublanes (native NCW layout).
    # Squeeze: mean over W (lane axis) with f32 accumulation (XLU reduce).
    y = jnp.mean(x_ref[...], axis=-1, dtype=jnp.float32)              # (Bt, C)

    # Excitation: two bias-free linears on the MXU (weights pre-cast to f32
    # and hid pre-padded to a lane multiple in the wrapper).
    h = jnp.maximum(
        jnp.dot(y, w1_ref[...], preferred_element_type=jnp.float32), 0.0)
    g = jax.nn.sigmoid(
        jnp.dot(h, w2_ref[...], preferred_element_type=jnp.float32))  # (Bt, C)

    # Scale: re-read x (cheap VMEM loads, keeps the big tile's live range out
    # of the matmuls) and broadcast the gate along the W lane axis in the
    # input dtype (only the tiny gate is cast, no full-tile f32 copy).
    o_ref[...] = x_ref[...] * g[:, :, None].astype(o_ref.dtype)


# ---------------------------------------------------------------------------
# Two-phase path for very large W: (1) mean + gate, (2) apply gate per W tile.
# ---------------------------------------------------------------------------
def _se_gate_kernel(x_ref, w1_ref, w2_ref, gate_ref, sum_ref, *, inv_w):
    wi = pl.program_id(1)

    @pl.when(wi == 0)
    def _():
        sum_ref[...] = jnp.zeros_like(sum_ref)

    # Partial sum over this W tile (cross-lane reduce, f32 accumulation).
    sum_ref[...] += jnp.sum(x_ref[...], axis=-1, dtype=jnp.float32)   # (Bt, C)

    @pl.when(wi == pl.num_programs(1) - 1)
    def _():
        y = sum_ref[...] * inv_w                                      # (Bt, C)
        h = jnp.maximum(
            jnp.dot(y, w1_ref[...], preferred_element_type=jnp.float32), 0.0)
        g = jax.nn.sigmoid(
            jnp.dot(h, w2_ref[...], preferred_element_type=jnp.float32))
        gate_ref[...] = g[:, :, None].astype(gate_ref.dtype)          # (Bt, C, 1)


def _se_scale_kernel(x_ref, gate_ref, o_ref):
    # (Bt, C, Wt) * (Bt, C, 1): lane-dense broadcast along W.
    o_ref[...] = (x_ref[...] * gate_ref[...]).astype(o_ref.dtype)


# ---------------------------------------------------------------------------
# Hardware probing (chip-gated budgets)
# ---------------------------------------------------------------------------
def _tpu_params():
    """Returns (vmem_capacity_bytes, tensorcores_per_chip), conservatively."""
    vmem_cap = 64 * 1024 * 1024          # safe fallback (v7x per-TC size)
    n_cores = 1
    try:
        vmem_cap = int(pltpu.get_tpu_info().vmem_capacity_bytes)
    except Exception:
        pass
    try:
        kind = jax.devices()[0].device_kind.lower()
        if ("v7" in kind) or ("tpu7" in kind) or ("7x" in kind):
            n_cores = 2                  # v7x: 2 TensorCores share parallel axes
    except Exception:
        pass
    return vmem_cap, n_cores


# ---------------------------------------------------------------------------
# Wrapper
# ---------------------------------------------------------------------------
def se_block(x, w1t, w2t, *, batch_tile=None, w_tile=None):
    """x: (B, C, W); w1t: (C, C//r); w2t: (C//r, C). Returns (B, C, W)."""
    b, c, w = x.shape
    hid = w1t.shape[1]
    assert w1t.shape == (c, hid) and w2t.shape == (hid, c)

    vmem_cap, n_cores = _tpu_params()
    vmem_limit = (3 * vmem_cap) // 4        # explicit scoped-VMEM limit
    block_budget = vmem_cap // 6            # ~4 blocks in flight (2 in + 2 out)

    # Grid-invariant weight prep: f32 once in the wrapper (no per-grid-step
    # upcast in the kernel); zero-pad hid to a 128-lane multiple.
    w1f = w1t.astype(jnp.float32)
    w2f = w2t.astype(jnp.float32)
    pad = (-hid) % 128
    if pad:
        w1f = jnp.pad(w1f, ((0, 0), (0, pad)))
        w2f = jnp.pad(w2f, ((0, pad), (0, 0)))
    hid_p = hid + pad

    itemsize = x.dtype.itemsize
    per_batch_bytes = c * w * itemsize

    # ---- batch tile ----
    if batch_tile is None:
        bt = max(1, min(b, block_budget // max(per_batch_bytes, 1)))
        # Only split the batch axis to feed multiple TensorCores (v7x); on
        # single-TC chips the grid is a serial loop and splitting just adds
        # per-step overhead and shrinks the matmul M dimension.
        if n_cores > 1 and b >= n_cores and b // bt < n_cores:
            bt = max(1, b // n_cores)
        while b % bt:
            bt -= 1
    else:
        bt = batch_tile
    assert b % bt == 0, "batch_tile must divide B"

    fits_fused = (bt * per_batch_bytes <= block_budget) and (w_tile is None)

    if fits_fused:
        # Single pass over x: 1 HBM read + 1 HBM write (the bandwidth floor).
        return pl.pallas_call(
            _se_fused_kernel,
            out_shape=jax.ShapeDtypeStruct((b, c, w), x.dtype),
            grid=(b // bt,),
            in_specs=[
                pl.BlockSpec((bt, c, w), lambda i: (i, 0, 0)),
                pl.BlockSpec((c, hid_p), lambda i: (0, 0)),
                pl.BlockSpec((hid_p, c), lambda i: (0, 0)),
            ],
            out_specs=pl.BlockSpec((bt, c, w), lambda i: (i, 0, 0)),
            compiler_params=pltpu.CompilerParams(
                dimension_semantics=("parallel",),
                vmem_limit_bytes=vmem_limit,
            ),
        )(x, w1f, w2f)

    # ---- two-phase path (2 reads + 1 write of x) for very large W ----
    if w_tile is None:
        cap = max(128, block_budget // max(bt * c * itemsize, 1))
        wt = None
        k = min(w, cap) // 128
        while k >= 1:                       # largest lane-legal divisor <= cap
            cand = k * 128
            if w % cand == 0:
                wt = cand
                break
            k -= 1
        if wt is None:
            # No multiple-of-128 divisor of W fits the budget; fall back to the
            # full (lane-legal) axis and rely on the raised VMEM limit.
            wt = w
    else:
        wt = w_tile
    assert w % wt == 0, "w_tile must divide W"
    nw = w // wt

    # Phase 1: accumulate the mean over W tiles (W axis last, "arbitrary"),
    # then run the excitation FCs once per batch tile.
    gate = pl.pallas_call(
        functools.partial(_se_gate_kernel, inv_w=1.0 / w),
        out_shape=jax.ShapeDtypeStruct((b, c, 1), x.dtype),
        grid=(b // bt, nw),
        in_specs=[
            pl.BlockSpec((bt, c, wt), lambda i, j: (i, 0, j)),
            pl.BlockSpec((c, hid_p), lambda i, j: (0, 0)),
            pl.BlockSpec((hid_p, c), lambda i, j: (0, 0)),
        ],
        out_specs=pl.BlockSpec((bt, c, 1), lambda i, j: (i, 0, 0)),
        scratch_shapes=[pltpu.VMEM((bt, c), jnp.float32)],
        compiler_params=pltpu.CompilerParams(
            dimension_semantics=("parallel", "arbitrary"),
            vmem_limit_bytes=vmem_limit,
        ),
    )(x, w1f, w2f)

    # Phase 2: apply the gate per W tile, fully parallel grid.
    return pl.pallas_call(
        _se_scale_kernel,
        out_shape=jax.ShapeDtypeStruct((b, c, w), x.dtype),
        grid=(b // bt, nw),
        in_specs=[
            pl.BlockSpec((bt, c, wt), lambda i, j: (i, 0, j)),
            pl.BlockSpec((bt, c, 1), lambda i, j: (i, 0, 0)),
        ],
        out_specs=pl.BlockSpec((bt, c, wt), lambda i, j: (i, 0, j)),
        compiler_params=pltpu.CompilerParams(
            dimension_semantics=("parallel", "parallel"),
            vmem_limit_bytes=vmem_limit,
        ),
    )(x, gate)


def se_block_ref(x, w1t, w2t):
    y = jnp.mean(x, axis=-1)                               # (B, C)
    h = jnp.maximum(y @ w1t, 0.0)
    s = jax.nn.sigmoid(h @ w2t)
    return x * s[:, :, None]


if __name__ == "__main__":
    B, C, W = 2, 32, 16
    RATIO = 16
    HID = C // RATIO  # 2

    key = jax.random.PRNGKey(0)
    kx, k1, k2 = jax.random.split(key, 3)

    x = jax.random.normal(kx, (B, C, W), dtype=jnp.float32)
    # PyTorch Linear weights are (out, in); store pre-transposed for y @ W.T.
    w1 = jax.random.normal(k1, (HID, C), dtype=jnp.float32) * 0.1
    w2 = jax.random.normal(k2, (C, HID), dtype=jnp.float32) * 0.1
    w1t = w1.T  # (C, HID)
    w2t = w2.T  # (HID, C)

    ref = se_block_ref(x, w1t, w2t)

    # Fused single-pass path (auto tiling, native NCW layout).
    out_fused = se_block(x, w1t, w2t)
    jax.block_until_ready(out_fused)
    assert out_fused.shape == (B, C, W)
    assert jnp.allclose(out_fused, ref, atol=1e-5, rtol=1e-5), "fused mismatch"

    # Two-phase path forced (lane-legal W tile == full W here).
    out_tiled = se_block(x, w1t, w2t, batch_tile=1, w_tile=W)
    jax.block_until_ready(out_tiled)
    assert jnp.allclose(out_tiled, ref, atol=1e-5, rtol=1e-5), "tiled mismatch"

    # Larger W to exercise multi-tile accumulation over the "arbitrary" axis.
    x2 = jax.random.normal(kx, (B, C, 256), dtype=jnp.float32)
    ref2 = se_block_ref(x2, w1t, w2t)
    out2 = se_block(x2, w1t, w2t, batch_tile=1, w_tile=128)
    jax.block_until_ready(out2)
    assert jnp.allclose(out2, ref2, atol=1e-5, rtol=1e-5), "tiled mismatch (W=256)"

    print("KERNEL_OK")
</pallas_src>

<mosaic_0001>
module attributes {stable_mosaic.version = 11 : i64} {
  func.func @_se_fused_kernel(%arg0: i32, %arg1: memref<2x32x16xf32, #tpu.memory_space<vmem>>, %arg2: memref<32x128xf32, #tpu.memory_space<vmem>>, %arg3: memref<128x32xf32, #tpu.memory_space<vmem>>, %arg4: memref<2x32x16xf32, #tpu.memory_space<vmem>>) attributes {dimension_semantics = [#tpu.dimension_semantics<parallel>], iteration_bounds = array<i64: 1>, scalar_prefetch = 0 : i64, scratch_operands = 0 : i64, tpu.core_type = #tpu.core_type<tc>, window_params = [{transform_indices = @transform_0, window_bounds = array<i64: 2, 32, 16>}, {pipeline_mode = #tpu.pipeline_mode<synchronous>, transform_indices = @transform_1, window_bounds = array<i64: 32, 128>}, {pipeline_mode = #tpu.pipeline_mode<synchronous>, transform_indices = @transform_2, window_bounds = array<i64: 128, 32>}, {transform_indices = @transform_3, window_bounds = array<i64: 2, 32, 16>}]} {
    %c0 = arith.constant 0 : index
    %c0_0 = arith.constant 0 : index
    %c0_1 = arith.constant 0 : index
    %0 = vector.load %arg1[%c0, %c0_0, %c0_1] : memref<2x32x16xf32, #tpu.memory_space<vmem>>, vector<2x32x16xf32>
    %cst = arith.constant dense<0.000000e+00> : vector<2x32xf32>
    %1 = vector.multi_reduction <add>, %0, %cst [2] : vector<2x32x16xf32> to vector<2x32xf32>
    %cst_2 = arith.constant 1.600000e+01 : f32
    %2 = vector.broadcast %cst_2 : f32 to vector<2x32xf32>
    %3 = arith.divf %1, %2 : vector<2x32xf32>
    %c0_3 = arith.constant 0 : index
    %c0_4 = arith.constant 0 : index
    %4 = vector.load %arg2[%c0_3, %c0_4] : memref<32x128xf32, #tpu.memory_space<vmem>>, vector<32x128xf32>
    %cst_5 = arith.constant dense<0.000000e+00> : vector<2x128xf32>
    %5 = tpu.matmul %3, %4, %cst_5 {dimension_numbers = #tpu.dot_dimension_numbers<[1], [0], [0], [1], [0, 0, 1, 1], [], []>} : vector<2x32xf32>, vector<32x128xf32>, vector<2x128xf32> -> vector<2x128xf32>
    %cst_6 = arith.constant 0.000000e+00 : f32
    %6 = vector.broadcast %cst_6 : f32 to vector<2x128xf32>
    %7 = arith.maximumf %5, %6 : vector<2x128xf32>
    %c0_7 = arith.constant 0 : index
    %c0_8 = arith.constant 0 : index
    %8 = vector.load %arg3[%c0_7, %c0_8] : memref<128x32xf32, #tpu.memory_space<vmem>>, vector<128x32xf32>
    %cst_9 = arith.constant dense<0.000000e+00> : vector<2x32xf32>
    %9 = tpu.matmul %7, %8, %cst_9 {dimension_numbers = #tpu.dot_dimension_numbers<[1], [0], [0], [1], [0, 0, 1, 1], [], []>} : vector<2x128xf32>, vector<128x32xf32>, vector<2x32xf32> -> vector<2x32xf32>
    %10 = arith.negf %9 : vector<2x32xf32>
    %11 = math.exp %10 : vector<2x32xf32>
    %cst_10 = arith.constant 1.000000e+00 : f32
    %12 = vector.broadcast %cst_10 : f32 to vector<2x32xf32>
    %13 = arith.addf %12, %11 : vector<2x32xf32>
    %14 = arith.divf %12, %13 : vector<2x32xf32>
    %c0_11 = arith.constant 0 : index
    %c0_12 = arith.constant 0 : index
    %c0_13 = arith.constant 0 : index
    %15 = vector.load %arg1[%c0_11, %c0_12, %c0_13] : memref<2x32x16xf32, #tpu.memory_space<vmem>>, vector<2x32x16xf32>
    %16 = vector.shape_cast %14 : vector<2x32xf32> to vector<2x32x1xf32>
    %17 = vector.broadcast %16 : vector<2x32x1xf32> to vector<2x32x16xf32>
    %18 = arith.mulf %15, %17 : vector<2x32x16xf32>
    %c0_14 = arith.constant 0 : index
    %c0_15 = arith.constant 0 : index
    %c0_16 = arith.constant 0 : index
    %19 = vector.load %arg4[%c0_14, %c0_15, %c0_16] : memref<2x32x16xf32, #tpu.memory_space<vmem>>, vector<2x32x16xf32>
    tpu.vector_store %arg4[%c0_14, %c0_15, %c0_16], %18 {strides = array<i32>} : memref<2x32x16xf32, #tpu.memory_space<vmem>>, vector<2x32x16xf32>,
    return
  }
  func.func @transform_0(%arg0: i32) -> (i32, i32, i32) {
    %c0_i32 = arith.constant 0 : i32
    %c0_i32_0 = arith.constant 0 : i32
    %c0_i32_1 = arith.constant 0 : i32
    return %arg0, %c0_i32, %c0_i32_0 : i32, i32, i32
  }
  func.func @transform_1(%arg0: i32) -> (i32, i32) {
    %c0_i32 = arith.constant 0 : i32
    %c0_i32_0 = arith.constant 0 : i32
    %c0_i32_1 = arith.constant 0 : i32
    return %c0_i32, %c0_i32_0 : i32, i32
  }
  func.func @transform_2(%arg0: i32) -> (i32, i32) {
    %c0_i32 = arith.constant 0 : i32
    %c0_i32_0 = arith.constant 0 : i32
    %c0_i32_1 = arith.constant 0 : i32
    return %c0_i32, %c0_i32_0 : i32, i32
  }
  func.func @transform_3(%arg0: i32) -> (i32, i32, i32) {
    %c0_i32 = arith.constant 0 : i32
    %c0_i32_0 = arith.constant 0 : i32
    %c0_i32_1 = arith.constant 0 : i32
    return %arg0, %c0_i32, %c0_i32_0 : i32, i32, i32
  }
}

</mosaic_0001>

<llo_original>
// kernel: tpu_custom_call.1
$region0: #{tpu_custom_call.1}
  #allocation0 [shape = 'u32[]', space=smem, size = 0x4, offset = 0x4, fixed_abs, tag = 'smem constant byte address 0x4 - core index']
  #allocation1 [shape = 'u32[144,128]{1,0:T(1,128)}', space=vmem, size = 0x12000, scoped, tag = 'internal scratch']
  %s0 = inlined_call_operand.vmem [shape: f32[2,32,16], index: 0, kind: input, shape index: {}]
  %s1 = inlined_call_operand.vmem [shape: f32[32,128], index: 1, kind: input, shape index: {}]
  %s2 = inlined_call_operand.vmem [shape: f32[128,32], index: 2, kind: input, shape index: {}]
  %s3 = inlined_call_operand.vmem [shape: f32[2,32,16], index: 3, kind: output, shape index: {}]
  %s4 = sld [smem:[#allocation0]]
  $region22: #{tpu_custom_call.1} parent=0
    _
  %s6 = ssub.s32 1, %s4
  %s7 = scalar_select 0, %s6, %s4
  // Predicated region
  $region2: #{tpu_custom_call.1} parent=0 // pred_check
    _
  $region3: #{tpu_custom_call.1} parent=0 // pred_check_branch
    %9 = sbr.rel (0) target = $region5
  $region4: #{tpu_custom_call.1} parent=0 // pred_region
    _
  $region5: #{tpu_custom_call.1} parent=0 // pred_fallthru
    _
  // Predicated region
  $region6: #{tpu_custom_call.1} parent=0 // pred_check
    _
  $region7: #{tpu_custom_call.1} parent=0 // pred_check_branch
    %11 = sbr.rel (0) target = $region9
  $region8: #{tpu_custom_call.1} parent=0 // pred_region
    _
  $region9: #{tpu_custom_call.1} parent=0 // pred_fallthru
    _
  // Predicated region
  $region10: #{tpu_custom_call.1} parent=0 // pred_check
    _
  $region11: #{tpu_custom_call.1} parent=0 // pred_check_branch
    %13 = sbr.rel (0) target = $region13
  $region12: #{tpu_custom_call.1} parent=0 // pred_region
    _
  $region13: #{tpu_custom_call.1} parent=0 // pred_fallthru
    _
  %v14 = vld [vmem:[%s0] sm:$0xff]
  %v15 = vld [vmem:[%s0 + $0x8] sm:$0xff]
  %v16 = vld [vmem:[%s0 + $0x10] sm:$0xff]
  %v17 = vld [vmem:[%s0 + $0x18] sm:$0xff]
  %v18 = vld [vmem:[%s0 + $0x20] sm:$0xff]
  %v19 = vld [vmem:[%s0 + $0x28] sm:$0xff]
  %v20 = vld [vmem:[%s0 + $0x30] sm:$0xff]
  %v21 = vld [vmem:[%s0 + $0x38] sm:$0xff]
  %vm22 = vcmask 130048
  %v23 = vsel %vm22, %v14, 0.0
  %24 = vadd.xlane.f32.xlu0 %v23
  %v25 = vpop.xlane.xlu0 %24
  %v26 = vsel %vm22, %v15, 0.0
  %27 = vadd.xlane.f32.xlu0 %v26
  %v28 = vpop.xlane.xlu0 %27
  %v29 = vsel %vm22, %v16, 0.0
  %30 = vadd.xlane.f32.xlu0 %v29
  %v31 = vpop.xlane.xlu0 %30
  %v32 = vsel %vm22, %v17, 0.0
  %33 = vadd.xlane.f32.xlu0 %v32
  %v34 = vpop.xlane.xlu0 %33
  %v35 = vsel %vm22, %v18, 0.0
  %36 = vadd.xlane.f32.xlu0 %v35
  %v37 = vpop.xlane.xlu0 %36
  %v38 = vsel %vm22, %v19, 0.0
  %39 = vadd.xlane.f32.xlu0 %v38
  %v40 = vpop.xlane.xlu0 %39
  %v41 = vsel %vm22, %v20, 0.0
  %42 = vadd.xlane.f32.xlu0 %v41
  %v43 = vpop.xlane.xlu0 %42
  %v44 = vsel %vm22, %v21, 0.0
  %45 = vadd.xlane.f32.xlu0 %v44
  %v46 = vpop.xlane.xlu0 %45
  %v47 = vrcp.pop 16.0
  %v48 = vmul.f32 %v25, %v47
  %v49 = vmul.f32 %v28, %v47
  %v50 = vmul.f32 %v31, %v47
  %v51 = vmul.f32 %v34, %v47
  %v52 = vmul.f32 %v37, %v47
  %v53 = vmul.f32 %v40, %v47
  %v54 = vmul.f32 %v43, %v47
  %v55 = vmul.f32 %v46, %v47
  %v56 = vld [vmem:[%s1] sm:$0xff]
  %v57 = vld [vmem:[%s1 + $0x8] sm:$0xff]
  %v58 = vld [vmem:[%s1 + $0x10] sm:$0xff]
  %v59 = vld [vmem:[%s1 + $0x18] sm:$0xff]
  %v68 = vlaneseq
  %v69 = vand.u32 %v68, 127
  %v70 = vlaneseq
  %v71 = vshrl.u32 %v70, 7
  %v72 = vsub.s32 %v69, %v71
  %v73 = vrot.slane %v48, %v72
  %v74 = vadd.s32 %v69, 4294967288
  %v75 = vlaneseq
  %v76 = vshrl.u32 %v75, 7
  %v77 = vsub.s32 %v74, %v76
  %v78 = vrot.slane %v49, %v77
  %vm79 = vcmask 130112
  %v80 = vsel %vm79, %v78, %v73
  %v81 = vadd.s32 %v69, 4294967280
  %v82 = vlaneseq
  %v83 = vshrl.u32 %v82, 7
  %v84 = vsub.s32 %v81, %v83
  %v85 = vrot.slane %v50, %v84
  %vm86 = vcmask 195712
  %v87 = vsel %vm86, %v85, %v80
  %v88 = vadd.s32 %v69, 4294967272
  %v89 = vlaneseq
  %v90 = vshrl.u32 %v89, 7
  %v91 = vsub.s32 %v88, %v90
  %v92 = vrot.slane %v51, %v91
  %vm93 = vcmask 261312
  %v94 = vsel %vm93, %v92, %v87
  %v95 = vlaneseq
  %v96 = vshrl.u32 %v95, 7
  %v97 = vsub.s32 %v69, %v96
  %v98 = vrot.slane %v52, %v97
  %v99 = vlaneseq
  %v100 = vshrl.u32 %v99, 7
  %v101 = vsub.s32 %v74, %v100
  %v102 = vrot.slane %v53, %v101
  %v103 = vsel %vm79, %v102, %v98
  %v104 = vlaneseq
  %v105 = vshrl.u32 %v104, 7
  %v106 = vsub.s32 %v81, %v105
  %v107 = vrot.slane %v54, %v106
  %v108 = vsel %vm86, %v107, %v103
  %v109 = vlaneseq
  %v110 = vshrl.u32 %v109, 7
  %v111 = vsub.s32 %v88, %v110
  %v112 = vrot.slane %v55, %v111
  %v113 = vsel %vm93, %v112, %v108
  %vm114 = vcmask 1041409
  %v115 = vsel %vm114, %v113, %v94
  %vm116 = vcmask 261120
  %v117 = vsel %vm116, %v115, 0
  %119 = vmatprep.subr.mxu0 0.0
  %120 = vmatpush1.msra.mxu0 %v56
  %121 = vmatprep.subr.mxu0 0.0
  %122 = vmatpush1.msra.mxu0 %v57
  %123 = vmatprep.subr.mxu0 0.0
  %124 = vmatpush1.msra.mxu0 %v58
  %125 = vmatprep.subr.mxu0 0.0
  %126 = vmatpush1.msra.mxu0 %v59
  %127 = vmatprep.subr.mxu0 0.0
  %128 = vmatpush1.msra.mxu0 0.0
  %129 = vmatprep.subr.mxu0 0.0
  %130 = vmatpush1.msra.mxu0 0.0
  %131 = vmatprep.subr.mxu0 0.0
  %132 = vmatpush1.msra.mxu0 0.0
  %133 = vmatprep.subr.mxu0 0.0
  %134 = vmatpush1.msra.mxu0 0.0
  %135 = vmatprep.subr.mxu0 0.0
  %136 = vmatpush1.msra.mxu0 0.0
  %137 = vmatprep.subr.mxu0 0.0
  %138 = vmatpush1.msra.mxu0 0.0
  %139 = vmatprep.subr.mxu0 0.0
  %140 = vmatpush1.msra.mxu0 0.0
  %141 = vmatprep.subr.mxu0 0.0
  %142 = vmatpush1.msra.mxu0 0.0
  %143 = vmatprep.subr.mxu0 0.0
  %144 = vmatpush1.msra.mxu0 0.0
  %145 = vmatprep.subr.mxu0 0.0
  %146 = vmatpush1.msra.mxu0 0.0
  %147 = vmatprep.subr.mxu0 0.0
  %148 = vmatpush1.msra.mxu0 0.0
  %149 = vmatprep.subr.mxu0 0.0
  %150 = vmatpush1.msra.mxu0 0.0
  %151 = vmatprep.subr.mxu0 0.0
  %152 = vmatpush1.msra.mxu0 0.0
  %153 = vmatprep.subr.mxu0 0.0
  %154 = vmatpush1.msra.mxu0 0.0
  %155 = vmatprep.subr.mxu0 0.0
  %156 = vmatpush1.msra.mxu0 0.0
  %157 = vmatprep.subr.mxu0 0.0
  %158 = vmatpush1.msra.mxu0 0.0
  %159 = vmatprep.subr.mxu0 0.0
  %160 = vmatpush1.msra.mxu0 0.0
  %161 = vmatprep.subr.mxu0 0.0
  %162 = vmatpush1.msra.mxu0 0.0
  %163 = vmatprep.subr.mxu0 0.0
  %164 = vmatpush1.msra.mxu0 0.0
  %165 = vmatprep.subr.mxu0 0.0
  %166 = vmatpush1.msra.mxu0 0.0
  %167 = vmatprep.subr.mxu0 0.0
  %168 = vmatpush1.msra.mxu0 0.0
  %169 = vmatprep.subr.mxu0 0.0
  %170 = vmatpush1.msra.mxu0 0.0
  %171 = vmatprep.subr.mxu0 0.0
  %172 = vmatpush1.msra.mxu0 0.0
  %173 = vmatprep.subr.mxu0 0.0
  %174 = vmatpush1.msra.mxu0 0.0
  %175 = vmatprep.subr.mxu0 0.0
  %176 = vmatpush1.msra.mxu0 0.0
  %177 = vmatprep.subr.mxu0 0.0
  %178 = vmatpush1.msra.mxu0 0.0
  %179 = vmatprep.subr.mxu0 0.0
  %180 = vmatpush1.msra.mxu0 0.0
  %181 = vmatprep.subr.mxu0 0.0
  %182 = vmatpush1.msra.mxu0 0.0
  %183 = vmatprep.mubr.f32.mxu0 0.0
  %184 = vmatmul.mubr.f32.gmra.mrb[0].mxu0 %v117
  %v185 = vpop.f32.mrb[0].mxu0
  %v186 = vadd.f32 0.0, %v185
  %v187 = vpop.f32.mrb[0].mxu0
  %188 = vdwg.mxu0
  %v189 = vmax.f32 %v186, 0.0
  %v190 = vld [vmem:[%s2] sm:$0xff]
  %v191 = vld [vmem:[%s2 + $0x8] sm:$0xff]
  %v192 = vld [vmem:[%s2 + $0x10] sm:$0xff]
  %v193 = vld [vmem:[%s2 + $0x18] sm:$0xff]
  %v194 = vld [vmem:[%s2 + $0x20] sm:$0xff]
  %v195 = vld [vmem:[%s2 + $0x28] sm:$0xff]
  %v196 = vld [vmem:[%s2 + $0x30] sm:$0xff]
  %v197 = vld [vmem:[%s2 + $0x38] sm:$0xff]
  %v198 = vld [vmem:[%s2 + $0x40] sm:$0xff]
  %v199 = vld [vmem:[%s2 + $0x48] sm:$0xff]
  %v200 = vld [vmem:[%s2 + $0x50] sm:$0xff]
  %v201 = vld [vmem:[%s2 + $0x58] sm:$0xff]
  %v202 = vld [vmem:[%s2 + $0x60] sm:$0xff]
  %v203 = vld [vmem:[%s2 + $0x68] sm:$0xff]
  %v204 = vld [vmem:[%s2 + $0x70] sm:$0xff]
  %v205 = vld [vmem:[%s2 + $0x78] sm:$0xff]
  %206 = vmatprep.subr.mxu0 0.0
  %207 = vmatpush1.msra.mxu0 %v190
  %208 = vmatprep.subr.mxu0 0.0
  %209 = vmatpush1.msra.mxu0 %v191
  %210 = vmatprep.subr.mxu0 0.0
  %211 = vmatpush1.msra.mxu0 %v192
  %212 = vmatprep.subr.mxu0 0.0
  %213 = vmatpush1.msra.mxu0 %v193
  %214 = vmatprep.subr.mxu0 0.0
  %215 = vmatpush1.msra.mxu0 %v194
  %216 = vmatprep.subr.mxu0 0.0
  %217 = vmatpush1.msra.mxu0 %v195
  %218 = vmatprep.subr.mxu0 0.0
  %219 = vmatpush1.msra.mxu0 %v196
  %220 = vmatprep.subr.mxu0 0.0
  %221 = vmatpush1.msra.mxu0 %v197
  %222 = vmatprep.subr.mxu0 0.0
  %223 = vmatpush1.msra.mxu0 %v198
  %224 = vmatprep.subr.mxu0 0.0
  %225 = vmatpush1.msra.mxu0 %v199
  %226 = vmatprep.subr.mxu0 0.0
  %227 = vmatpush1.msra.mxu0 %v200
  %228 = vmatprep.subr.mxu0 0.0
  %229 = vmatpush1.msra.mxu0 %v201
  %230 = vmatprep.subr.mxu0 0.0
  %231 = vmatpush1.msra.mxu0 %v202
  %232 = vmatprep.subr.mxu0 0.0
  %233 = vmatpush1.msra.mxu0 %v203
  %234 = vmatprep.subr.mxu0 0.0
  %235 = vmatpush1.msra.mxu0 %v204
  %236 = vmatprep.subr.mxu0 0.0
  %237 = vmatpush1.msra.mxu0 %v205
  %238 = vmatprep.subr.mxu0 0.0
  %239 = vmatpush1.msra.mxu0 0.0
  %240 = vmatprep.subr.mxu0 0.0
  %241 = vmatpush1.msra.mxu0 0.0
  %242 = vmatprep.subr.mxu0 0.0
  %243 = vmatpush1.msra.mxu0 0.0
  %244 = vmatprep.subr.mxu0 0.0
  %245 = vmatpush1.msra.mxu0 0.0
  %246 = vmatprep.subr.mxu0 0.0
  %247 = vmatpush1.msra.mxu0 0.0
  %248 = vmatprep.subr.mxu0 0.0
  %249 = vmatpush1.msra.mxu0 0.0
  %250 = vmatprep.subr.mxu0 0.0
  %251 = vmatpush1.msra.mxu0 0.0
  %252 = vmatprep.subr.mxu0 0.0
  %253 = vmatpush1.msra.mxu0 0.0
  %254 = vmatprep.subr.mxu0 0.0
  %255 = vmatpush1.msra.mxu0 0.0
  %256 = vmatprep.subr.mxu0 0.0
  %257 = vmatpush1.msra.mxu0 0.0
  %258 = vmatprep.subr.mxu0 0.0
  %259 = vmatpush1.msra.mxu0 0.0
  %260 = vmatprep.subr.mxu0 0.0
  %261 = vmatpush1.msra.mxu0 0.0
  %262 = vmatprep.subr.mxu0 0.0
  %263 = vmatpush1.msra.mxu0 0.0
  %264 = vmatprep.subr.mxu0 0.0
  %265 = vmatpush1.msra.mxu0 0.0
  %266 = vmatprep.subr.mxu0 0.0
  %267 = vmatpush1.msra.mxu0 0.0
  %268 = vmatprep.subr.mxu0 0.0
  %269 = vmatpush1.msra.mxu0 0.0
  %270 = vmatprep.mubr.f32.mxu0 0.0
  %271 = vmatmul.mubr.f32.gmra.mrb[0].mxu0 %v189
  %v272 = vpop.f32.mrb[0].mxu0
  %v273 = vadd.f32 0.0, %v272
  %v274 = vpop.f32.mrb[0].mxu0
  %275 = vdwg.mxu0
  %v276 = vxor.u32 %v273, 2147483648
  %v277 = vmul.f32 %v276, 1.442695
  %v278 = vpow.pop %v277
  %v279 = vadd.f32 %v278, 1.0
  %v280 = vrcp.pop %v279
  %v281 = vmul.f32 1.0, %v280
  %v282 = vlaneseq
  %v283 = vshrl.u32 %v282, 7
  %v284 = vsub.s32 0, %v283
  %v285 = vrot.slane %v281, %v284
  %287 = vbcast.lane.b32.xlu0 %v285, 256
  %v288 = vpop.permute.xlu0 %287
  %s290 = sor.u32 256, 8
  %291 = vbcast.lane.b32.xlu0 %v285, %s290
  %v292 = vpop.permute.xlu0 %291
  %s294 = sor.u32 256, 16
  %295 = vbcast.lane.b32.xlu0 %v285, %s294
  %v296 = vpop.permute.xlu0 %295
  %s298 = sor.u32 256, 24
  %299 = vbcast.lane.b32.xlu0 %v285, %s298
  %v300 = vpop.permute.xlu0 %299
  %v301 = vlaneseq
  %v302 = vshrl.u32 %v301, 7
  %v303 = vsub.s32 1, %v302
  %v304 = vrot.slane %v281, %v303
  %306 = vbcast.lane.b32.xlu0 %v304, 256
  %v307 = vpop.permute.xlu0 %306
  %s309 = sor.u32 256, 8
  %310 = vbcast.lane.b32.xlu0 %v304, %s309
  %v311 = vpop.permute.xlu0 %310
  %s313 = sor.u32 256, 16
  %314 = vbcast.lane.b32.xlu0 %v304, %s313
  %v315 = vpop.permute.xlu0 %314
  %s317 = sor.u32 256, 24
  %318 = vbcast.lane.b32.xlu0 %v304, %s317
  %v319 = vpop.permute.xlu0 %318
  %v320 = vmul.f32 %v14, %v288
  %v321 = vmul.f32 %v15, %v292
  %v322 = vmul.f32 %v16, %v296
  %v323 = vmul.f32 %v17, %v300
  %v324 = vmul.f32 %v18, %v307
  %v325 = vmul.f32 %v19, %v311
  %v326 = vmul.f32 %v20, %v315
  %v327 = vmul.f32 %v21, %v319
  %328 = vst.msk [vmem:[%s3] sm:$0xff] %vm22, %v320
  %329 = vst.msk [vmem:[%s3 + $0x8] sm:$0xff] %vm22, %v321
  %330 = vst.msk [vmem:[%s3 + $0x10] sm:$0xff] %vm22, %v322
  %331 = vst.msk [vmem:[%s3 + $0x18] sm:$0xff] %vm22, %v323
  %332 = vst.msk [vmem:[%s3 + $0x20] sm:$0xff] %vm22, %v324
  %333 = vst.msk [vmem:[%s3 + $0x28] sm:$0xff] %vm22, %v325
  %334 = vst.msk [vmem:[%s3 + $0x30] sm:$0xff] %vm22, %v326
  %335 = vst.msk [vmem:[%s3 + $0x38] sm:$0xff] %vm22, %v327
  // Predicated region
  $region14: #{tpu_custom_call.1} parent=0 // pred_check
    _
  $region15: #{tpu_custom_call.1} parent=0 // pred_check_branch
    %337 = sbr.rel (0) target = $region17
  $region16: #{tpu_custom_call.1} parent=0 // pred_region
    _
  $region17: #{tpu_custom_call.1} parent=0 // pred_fallthru
    _
  // Predicated region
  $region18: #{tpu_custom_call.1} parent=0 // pred_check
    _
  $region19: #{tpu_custom_call.1} parent=0 // pred_check_branch
    %339 = sbr.rel (0) target = $region21
  $region20: #{tpu_custom_call.1} parent=0 // pred_region
    _
  $region21: #{tpu_custom_call.1} parent=0 // pred_fallthru
    _

</llo_original>
